<compile_context>
chip_gen: v6e
topology: v6e:2x2x1
jax: 0.10.0
libtpu: 0.0.40
codegen_flags: <defaults>
</compile_context>

<pallas_src>
import functools

import jax
import jax.numpy as jnp
from jax.experimental import pallas as pl
from jax.experimental.pallas import tpu as pltpu


def _gbn_kernel(x_ref, g_ref, b_ref, o_ref, *, eps, n_elems):
    # x_ref/o_ref: (Nb, Gb, Cg, HW)   g_ref/b_ref: (Gb, Cg, 1)
    x = x_ref[...]

    # Pass 1: mean. f32-accumulating reduction on the raw load (lane reduce
    # first, then the small sublane reduce) -- no block-sized f32 temp kept.
    s1 = jnp.sum(jnp.sum(x, axis=3, keepdims=True, dtype=jnp.float32),
                 axis=2, keepdims=True)                  # (Nb, Gb, 1, 1)
    mean = s1 * (1.0 / n_elems)

    # Pass 2: centered sum of squares (two-pass variance; matches torch.std
    # numerically, avoids E[x^2]-E[x]^2 cancellation).  Data is VMEM-resident
    # so this extra sweep is free under the HBM roofline.
    d = x.astype(jnp.float32) - mean
    ssq = jnp.sum(jnp.sum(d * d, axis=3, keepdims=True),
                  axis=2, keepdims=True)                 # (Nb, Gb, 1, 1)
    std = jnp.sqrt(ssq * (1.0 / (n_elems - 1)))          # unbiased (n - 1)

    # Fold 1/(std + eps) into the affine -> write pass is one FMA / element.
    inv = pl.reciprocal(std + eps, approx=False)         # (Nb, Gb, 1, 1)
    gamma = g_ref[...].astype(jnp.float32)[None]         # (1, Gb, Cg, 1)
    beta = b_ref[...].astype(jnp.float32)[None]          # (1, Gb, Cg, 1)
    scale = gamma * inv                                  # (Nb, Gb, Cg, 1)
    bias = beta - mean * scale                           # (Nb, Gb, Cg, 1)

    o_ref[...] = (x * scale + bias).astype(o_ref.dtype)


def _largest_divisor_leq(n, cap):
    cap = int(max(1, min(n, cap)))
    for d in range(cap, 0, -1):
        if n % d == 0:
            return d
    return 1


def _round_up(v, m):
    return ((v + m - 1) // m) * m


def _vmem_capacity_bytes():
    # Generation-aware physical VMEM: 128 MiB on v5e/v6e, 64 MiB/TC on v7x.
    # Fall back to the conservative 64 MiB if the query is unavailable.
    try:
        cap = int(getattr(pltpu.get_tpu_info(), "vmem_capacity_bytes", 0))
    except Exception:
        cap = 0
    return cap if cap > 0 else (64 << 20)


def group_batchnorm2d(x, gamma, beta, group_num=16, eps=1e-10,
                      target_block_bytes=4 << 20):
    """x: (N, C, H, W) NCHW; gamma/beta: (C,). Returns (N, C, H, W)."""
    N, C, H, W = x.shape
    G = group_num
    assert C >= G and C % G == 0, "channel-aligned groups required"
    Cg = C // G
    HW = H * W
    assert Cg * HW > 1, "degenerate 1-element group (std undefined)"

    # No padding / slicing: BlockSpec last two dims are the full extents.
    xr = x.reshape(N, G, Cg, HW)
    gr = gamma.reshape(G, Cg, 1)
    br = beta.reshape(G, Cg, 1)

    itemsize = jnp.dtype(x.dtype).itemsize
    # VMEM footprint of one (n, g) group slab (last two dims tile to (8,128)).
    group_bytes = _round_up(Cg, 8) * _round_up(HW, 128) * itemsize

    vmem_cap = _vmem_capacity_bytes()
    dual_tc = vmem_cap < (100 << 20)   # v7x (64 MiB / TC) has 2 TensorCores

    # Pack groups (and, for small groups, batch elements) into ~4 MiB blocks.
    Gb = _largest_divisor_leq(G, max(1, target_block_bytes // group_bytes))
    Nb = 1
    if Gb == G and N >= 2:
        Nb = _largest_divisor_leq(
            N, max(1, target_block_bytes // (G * group_bytes)))

    # On dual-TC chips keep >= 2 grid steps so "parallel" semantics can shard
    # across cores and the in/out DMA pipeline overlaps compute; on single-TC
    # chips the grid is a serial loop, so prefer the single largest block.
    if dual_tc and (N // Nb) * (G // Gb) < 2:
        if Nb > 1:
            Nb = _largest_divisor_leq(N, N // 2)
        elif Gb > 1:
            Gb = _largest_divisor_leq(G, G // 2)
    # TODO(synk): if a single group slab (group_bytes) exceeds ~8 MiB on v7x,
    # split HW over an extra "arbitrary" grid axis (accumulate s1/ssq in VMEM
    # scratch with pl.when init/finalize, then a revisit normalize pass) so
    # in + out still double-buffer inside the 64 MiB VMEM.

    block_bytes = Nb * Gb * group_bytes
    vmem_limit = int(min(max(32 << 20, 6 * block_bytes + (4 << 20)),
                         (3 * vmem_cap) // 4))

    kernel = functools.partial(_gbn_kernel, eps=eps, n_elems=Cg * HW)

    out = pl.pallas_call(
        kernel,
        out_shape=jax.ShapeDtypeStruct((N, G, Cg, HW), x.dtype),
        grid_spec=pltpu.PrefetchScalarGridSpec(
            num_scalar_prefetch=0,
            # g outermost / n innermost: the gamma/beta block index is constant
            # along the inner axis, so Pallas skips re-fetching the tiny
            # parameter blocks between consecutive steps.
            grid=(G // Gb, N // Nb),
            in_specs=[
                pl.BlockSpec((Nb, Gb, Cg, HW), lambda g, n: (n, g, 0, 0)),
                pl.BlockSpec((Gb, Cg, 1), lambda g, n: (g, 0, 0)),
                pl.BlockSpec((Gb, Cg, 1), lambda g, n: (g, 0, 0)),
            ],
            out_specs=pl.BlockSpec((Nb, Gb, Cg, HW), lambda g, n: (n, g, 0, 0)),
        ),
        compiler_params=pltpu.CompilerParams(
            dimension_semantics=("parallel", "parallel"),
            vmem_limit_bytes=vmem_limit),
    )(xr, gr, br)

    return out.reshape(N, C, H, W)


def _reference(x, gamma, beta, group_num, eps=1e-10):
    # pure-JAX reference mirroring the PyTorch forward (unbiased std)
    N, C, H, W = x.shape
    xg = x.reshape(N, group_num, -1).astype(jnp.float32)
    mean = jnp.mean(xg, axis=2, keepdims=True)
    var = jnp.sum((xg - mean) ** 2, axis=2, keepdims=True) / (xg.shape[2] - 1)
    std = jnp.sqrt(var)
    xn = ((xg - mean) / (std + eps)).reshape(N, C, H, W)
    return xn * gamma.reshape(1, C, 1, 1) + beta.reshape(1, C, 1, 1)


if __name__ == "__main__":
    key = jax.random.PRNGKey(0)
    k1, k2, k3, k4 = jax.random.split(key, 4)
    eps = 1e-10

    # --- Test 1: canonical small shape (lane-aligned HW = 256) -------------
    N, C, H, W = 2, 4, 16, 16
    G = 2  # c_num >= group_num, C % group_num == 0
    x = jax.random.normal(k1, (N, C, H, W), dtype=jnp.float32)
    # module __init__: gamma ~ randn(c_num,1,1), beta = zeros(c_num,1,1)
    gamma = jax.random.normal(k2, (C,), dtype=jnp.float32)
    beta = jnp.zeros((C,), dtype=jnp.float32)

    out = group_batchnorm2d(x, gamma, beta, group_num=G, eps=eps)
    out = jax.block_until_ready(out)
    ref = _reference(x, gamma, beta, G, eps)
    assert out.shape == (N, C, H, W)
    assert jnp.allclose(out, ref, atol=1e-4, rtol=1e-4), "mismatch (test 1)"

    # --- Test 2: non-lane-aligned HW (100 -> masked lane stores, no pad) ---
    N2, C2, H2, W2, G2 = 4, 8, 10, 10, 4
    x2 = jax.random.normal(k3, (N2, C2, H2, W2), dtype=jnp.float32)
    gamma2 = jax.random.normal(k4, (C2,), dtype=jnp.float32)
    beta2 = 0.1 * jax.random.normal(jax.random.PRNGKey(1), (C2,),
                                    dtype=jnp.float32)

    out2 = group_batchnorm2d(x2, gamma2, beta2, group_num=G2, eps=eps)
    out2 = jax.block_until_ready(out2)
    ref2 = _reference(x2, gamma2, beta2, G2, eps)
    assert out2.shape == (N2, C2, H2, W2)
    assert jnp.allclose(out2, ref2, atol=1e-4, rtol=1e-4), "mismatch (test 2)"

    print("KERNEL_OK")
</pallas_src>

<mosaic_0001>
module attributes {stable_mosaic.version = 11 : i64} {
  func.func @_gbn_kernel(%arg0: i32, %arg1: i32, %arg2: memref<1x2x2x256xf32, #tpu.memory_space<vmem>>, %arg3: memref<2x2x1xf32, #tpu.memory_space<vmem>>, %arg4: memref<2x2x1xf32, #tpu.memory_space<vmem>>, %arg5: memref<1x2x2x256xf32, #tpu.memory_space<vmem>>) attributes {dimension_semantics = [#tpu.dimension_semantics<parallel>, #tpu.dimension_semantics<parallel>], iteration_bounds = array<i64: 1, 2>, scalar_prefetch = 0 : i64, scratch_operands = 0 : i64, tpu.core_type = #tpu.core_type<tc>, window_params = [{transform_indices = @transform_0, window_bounds = array<i64: 1, 2, 2, 256>}, {transform_indices = @transform_1, window_bounds = array<i64: 2, 2, 1>}, {transform_indices = @transform_2, window_bounds = array<i64: 2, 2, 1>}, {transform_indices = @transform_3, window_bounds = array<i64: 1, 2, 2, 256>}]} {
    %c0 = arith.constant 0 : index
    %c0_0 = arith.constant 0 : index
    %c0_1 = arith.constant 0 : index
    %c0_2 = arith.constant 0 : index
    %0 = vector.load %arg2[%c0, %c0_0, %c0_1, %c0_2] : memref<1x2x2x256xf32, #tpu.memory_space<vmem>>, vector<1x2x2x256xf32>
    %cst = arith.constant dense<0.000000e+00> : vector<1x2x2xf32>
    %1 = vector.multi_reduction <add>, %0, %cst [3] : vector<1x2x2x256xf32> to vector<1x2x2xf32>
    %2 = vector.shape_cast %1 : vector<1x2x2xf32> to vector<1x2x2x1xf32>
    %cst_3 = arith.constant dense<0.000000e+00> : vector<1x2x1xf32>
    %3 = vector.multi_reduction <add>, %2, %cst_3 [2] : vector<1x2x2x1xf32> to vector<1x2x1xf32>
    %4 = vector.shape_cast %3 : vector<1x2x1xf32> to vector<1x2x1x1xf32>
    %cst_4 = arith.constant 0.001953125 : f32
    %5 = vector.broadcast %cst_4 : f32 to vector<1x2x1x1xf32>
    %6 = arith.mulf %4, %5 : vector<1x2x1x1xf32>
    %7 = vector.broadcast %6 : vector<1x2x1x1xf32> to vector<1x2x2x256xf32>
    %8 = arith.subf %0, %7 : vector<1x2x2x256xf32>
    %9 = arith.mulf %8, %8 : vector<1x2x2x256xf32>
    %cst_5 = arith.constant dense<0.000000e+00> : vector<1x2x2xf32>
    %10 = vector.multi_reduction <add>, %9, %cst_5 [3] : vector<1x2x2x256xf32> to vector<1x2x2xf32>
    %11 = vector.shape_cast %10 : vector<1x2x2xf32> to vector<1x2x2x1xf32>
    %cst_6 = arith.constant dense<0.000000e+00> : vector<1x2x1xf32>
    %12 = vector.multi_reduction <add>, %11, %cst_6 [2] : vector<1x2x2x1xf32> to vector<1x2x1xf32>
    %13 = vector.shape_cast %12 : vector<1x2x1xf32> to vector<1x2x1x1xf32>
    %cst_7 = arith.constant 0.00195694715 : f32
    %14 = vector.broadcast %cst_7 : f32 to vector<1x2x1x1xf32>
    %15 = arith.mulf %13, %14 : vector<1x2x1x1xf32>
    %16 = math.sqrt %15 : vector<1x2x1x1xf32>
    %cst_8 = arith.constant 1.000000e-10 : f32
    %17 = vector.broadcast %cst_8 : f32 to vector<1x2x1x1xf32>
    %18 = arith.addf %16, %17 : vector<1x2x1x1xf32>
    %19 = tpu.reciprocal %18 : vector<1x2x1x1xf32> -> vector<1x2x1x1xf32>
    %c0_9 = arith.constant 0 : index
    %c0_10 = arith.constant 0 : index
    %c0_11 = arith.constant 0 : index
    %20 = vector.load %arg3[%c0_9, %c0_10, %c0_11] : memref<2x2x1xf32, #tpu.memory_space<vmem>>, vector<2x2x1xf32>
    %21 = vector.shape_cast %20 : vector<2x2x1xf32> to vector<1x2x2x1xf32>
    %c0_12 = arith.constant 0 : index
    %c0_13 = arith.constant 0 : index
    %c0_14 = arith.constant 0 : index
    %22 = vector.load %arg4[%c0_12, %c0_13, %c0_14] : memref<2x2x1xf32, #tpu.memory_space<vmem>>, vector<2x2x1xf32>
    %23 = vector.shape_cast %22 : vector<2x2x1xf32> to vector<1x2x2x1xf32>
    %24 = vector.broadcast %19 : vector<1x2x1x1xf32> to vector<1x2x2x1xf32>
    %25 = arith.mulf %21, %24 : vector<1x2x2x1xf32>
    %26 = vector.broadcast %6 : vector<1x2x1x1xf32> to vector<1x2x2x1xf32>
    %27 = arith.mulf %26, %25 : vector<1x2x2x1xf32>
    %28 = arith.subf %23, %27 : vector<1x2x2x1xf32>
    %29 = vector.broadcast %25 : vector<1x2x2x1xf32> to vector<1x2x2x256xf32>
    %30 = arith.mulf %0, %29 : vector<1x2x2x256xf32>
    %31 = vector.broadcast %28 : vector<1x2x2x1xf32> to vector<1x2x2x256xf32>
    %32 = arith.addf %30, %31 : vector<1x2x2x256xf32>
    %c0_15 = arith.constant 0 : index
    %c0_16 = arith.constant 0 : index
    %c0_17 = arith.constant 0 : index
    %c0_18 = arith.constant 0 : index
    %33 = vector.load %arg5[%c0_15, %c0_16, %c0_17, %c0_18] : memref<1x2x2x256xf32, #tpu.memory_space<vmem>>, vector<1x2x2x256xf32>
    tpu.vector_store %arg5[%c0_15, %c0_16, %c0_17, %c0_18], %32 {strides = array<i32>} : memref<1x2x2x256xf32, #tpu.memory_space<vmem>>, vector<1x2x2x256xf32>,
    return
  }
  func.func @transform_0(%arg0: i32, %arg1: i32) -> (i32, i32, i32, i32) {
    %c0_i32 = arith.constant 0 : i32
    %c0_i32_0 = arith.constant 0 : i32
    %c0_i32_1 = arith.constant 0 : i32
    return %arg1, %arg0, %c0_i32, %c0_i32_0 : i32, i32, i32, i32
  }
  func.func @transform_1(%arg0: i32, %arg1: i32) -> (i32, i32, i32) {
    %c0_i32 = arith.constant 0 : i32
    %c0_i32_0 = arith.constant 0 : i32
    %c0_i32_1 = arith.constant 0 : i32
    return %arg0, %c0_i32, %c0_i32_0 : i32, i32, i32
  }
  func.func @transform_2(%arg0: i32, %arg1: i32) -> (i32, i32, i32) {
    %c0_i32 = arith.constant 0 : i32
    %c0_i32_0 = arith.constant 0 : i32
    %c0_i32_1 = arith.constant 0 : i32
    return %arg0, %c0_i32, %c0_i32_0 : i32, i32, i32
  }
  func.func @transform_3(%arg0: i32, %arg1: i32) -> (i32, i32, i32, i32) {
    %c0_i32 = arith.constant 0 : i32
    %c0_i32_0 = arith.constant 0 : i32
    %c0_i32_1 = arith.constant 0 : i32
    return %arg1, %arg0, %c0_i32, %c0_i32_0 : i32, i32, i32, i32
  }
}

</mosaic_0001>

<llo_original>
// kernel: tpu_custom_call.1
$region0: #{tpu_custom_call.1}
  #allocation0 [shape = 'u32[]', space=smem, size = 0x4, offset = 0x4, fixed_abs, tag = 'smem constant byte address 0x4 - core index']
  #allocation1 [shape = 'u32[144,128]{1,0:T(1,128)}', space=vmem, size = 0x12000, scoped, tag = 'internal scratch']
  %s0 = inlined_call_operand.hbm [shape: f32[2,2,2,256], index: 0, kind: input, shape index: {}]
  %s1 = inlined_call_operand.vmem [shape: f32[2,2,1], index: 1, kind: input, shape index: {}]
  %s2 = inlined_call_operand.vmem [shape: f32[2,2,1], index: 2, kind: input, shape index: {}]
  %s3 = inlined_call_operand.hbm [shape: f32[2,2,2,256], index: 3, kind: output, shape index: {}]
  %s4 = sld [smem:[#allocation0]]
  $region49: #{tpu_custom_call.1} parent=0
    _
  %s6 = ssub.s32 1, %s4
  %s7 = scalar_select 0, %s6, %s4
  $region1: #{tpu_custom_call.1} parent=0
    #allocation2 [shape = 'u8[8192]{0}', space=vmem, size = 0x2000, scoped, tag = 'input window, operand 0']
    #allocation3 [shape = 's32[2]{0}', space=sflag, size = 0x8, scoped, tag = 'scoped memory for tpu_custom_call.1']
    #allocation4 [shape = 's32[2]{0}', space=sflag, size = 0x8, scoped, tag = 'scoped memory for tpu_custom_call.1']
    #allocation5 [shape = 'u8[8192]{0}', space=vmem, size = 0x2000, scoped, tag = 'output window, operand 0']
    %8 = vsyncpa [#allocation3], 0
    %s9 = scalar_lea.sflag [#allocation3], 1
    %10 = vsyncpa %s9, 0
    %11 = vsyncpa [#allocation4], 0
    %s12 = scalar_lea.sflag [#allocation4], 1
    %13 = vsyncpa %s12, 0
    loop: start=0, step=1, limit=4
    $region2: #{tpu_custom_call.1} parent=1 // loop_pre_header
      _
    $region3: #{tpu_custom_call.1} parent=1 // loop_header
      %s15 = sphi 0, %s19
      %p16 = scmp.ge.s32.totalorder %s15, 4
      %s22 = sphi 0, %s34
      %s23 = sphi 0, %s30
      %s24 = sphi 0, %s22
      %s25 = sphi 0, %s23
      %s26 = sphi 0, %s24
      %s27 = sphi 0, %s25
      %s39 = sphi 0, %s41
      %s42 = sphi 0, %s39
      %s43 = sphi 0, %s42
      %s59 = sphi 0, %s43
      %s65 = sphi 0, %s67
      %s68 = sphi 0, %s65
      %s69 = sphi 0, %s68
      %s85 = sphi 0, %s69
      %s91 = sphi 0, %s93
      %s94 = sphi 0, %s91
      %s95 = sphi 0, %s94
      %s111 = sphi 0, %s95
      %s119 = sphi 0, %s121
      %s122 = sphi 0, %s119
      %s123 = sphi 0, %s122
      %s139 = sphi 0, %s123
    $region4: #{tpu_custom_call.1} parent=1 // loop_header_branch
      %18 = sbr.rel (%p16) target = $region8
    $region5: #{tpu_custom_call.1} parent=1 // loop_body
      %s20 = ssub.s32 %s15, 1
      %s21 = ssub.s32 %s15, 2
      %s28 = sadd.s32 1, %s23
      %p29 = scmp.ge.s32.totalorder %s28, 2
      %s30 = scalar_select %p29, 0, %s28
      %s31 = sadd.s32 1, %s22
      %s32 = scalar_select %p29, %s31, %s22
      %p33 = scmp.ge.s32.totalorder %s32, 1
      %s34 = scalar_select %p33, 0, %s32
      %s35 = ssub.s32 %s23, %s30
      %s36 = ssub.s32 %s22, %s34
      %s37 = sor.u32 %s35, %s36
      %p38 = scmp.eq.s32.totalorder %s37, 0
      %s40 = sadd.s32 %s39, 1
      %s41 = scalar_select %p38, %s39, %s40
      %p44 = pneg %p38
      %p45 = scmp.eq.s32.totalorder %s15, 1
      %p46 = por %p44, %p45
      %p47 = scmp.ne.s32.totalorder %s39, %s42
      %p48 = scmp.eq.s32.totalorder %s15, 0
      %p49 = por %p47, %p48
      %p50 = scmp.ne.s32.totalorder %s39, %s42
      %p51 = scmp.eq.s32.totalorder %s20, 1
      %p52 = por %p50, %p51
      %p53 = scmp.ne.s32.totalorder %s42, %s43
      %p54 = scmp.eq.s32.totalorder %s20, 0
      %p55 = por %p53, %p54
      %p56 = scmp.ne.s32.totalorder %s42, %s43
      %p57 = scmp.eq.s32.totalorder %s21, 1
      %p58 = por %p56, %p57
      %p60 = scmp.ne.s32.totalorder %s43, %s59
      %p61 = scmp.eq.s32.totalorder %s21, 0
      %p62 = por %p60, %p61
      %s63 = ssub.s32 %s22, %s34
      %p64 = scmp.eq.s32.totalorder %s63, 0
      %s66 = sadd.s32 %s65, 1
      %s67 = scalar_select %p64, %s65, %s66
      %p70 = pneg %p64
      %p71 = scmp.eq.s32.totalorder %s15, 1
      %p72 = por %p70, %p71
      %p73 = scmp.ne.s32.totalorder %s65, %s68
      %p74 = scmp.eq.s32.totalorder %s15, 0
      %p75 = por %p73, %p74
      %p76 = scmp.ne.s32.totalorder %s65, %s68
      %p77 = scmp.eq.s32.totalorder %s20, 1
      %p78 = por %p76, %p77
      %p79 = scmp.ne.s32.totalorder %s68, %s69
      %p80 = scmp.eq.s32.totalorder %s20, 0
      %p81 = por %p79, %p80
      %p82 = scmp.ne.s32.totalorder %s68, %s69
      %p83 = scmp.eq.s32.totalorder %s21, 1
      %p84 = por %p82, %p83
      %p86 = scmp.ne.s32.totalorder %s69, %s85
      %p87 = scmp.eq.s32.totalorder %s21, 0
      %p88 = por %p86, %p87
      %s89 = ssub.s32 %s22, %s34
      %p90 = scmp.eq.s32.totalorder %s89, 0
      %s92 = sadd.s32 %s91, 1
      %s93 = scalar_select %p90, %s91, %s92
      %p96 = pneg %p90
      %p97 = scmp.eq.s32.totalorder %s15, 1
      %p98 = por %p96, %p97
      %p99 = scmp.ne.s32.totalorder %s91, %s94
      %p100 = scmp.eq.s32.totalorder %s15, 0
      %p101 = por %p99, %p100
      %p102 = scmp.ne.s32.totalorder %s91, %s94
      %p103 = scmp.eq.s32.totalorder %s20, 1
      %p104 = por %p102, %p103
      %p105 = scmp.ne.s32.totalorder %s94, %s95
      %p106 = scmp.eq.s32.totalorder %s20, 0
      %p107 = por %p105, %p106
      %p108 = scmp.ne.s32.totalorder %s94, %s95
      %p109 = scmp.eq.s32.totalorder %s21, 1
      %p110 = por %p108, %p109
      %p112 = scmp.ne.s32.totalorder %s95, %s111
      %p113 = scmp.eq.s32.totalorder %s21, 0
      %p114 = por %p112, %p113
      %s115 = ssub.s32 %s23, %s30
      %s116 = ssub.s32 %s22, %s34
      %s117 = sor.u32 %s115, %s116
      %p118 = scmp.eq.s32.totalorder %s117, 0
      %s120 = sadd.s32 %s119, 1
      %s121 = scalar_select %p118, %s119, %s120
      %p124 = pneg %p118
      %p125 = scmp.eq.s32.totalorder %s15, 1
      %p126 = por %p124, %p125
      %p127 = scmp.ne.s32.totalorder %s119, %s122
      %p128 = scmp.eq.s32.totalorder %s15, 0
      %p129 = por %p127, %p128
      %p130 = scmp.ne.s32.totalorder %s119, %s122
      %p131 = scmp.eq.s32.totalorder %s20, 1
      %p132 = por %p130, %p131
      %p133 = scmp.ne.s32.totalorder %s122, %s123
      %p134 = scmp.eq.s32.totalorder %s20, 0
      %p135 = por %p133, %p134
      %p136 = scmp.ne.s32.totalorder %s122, %s123
      %p137 = scmp.eq.s32.totalorder %s21, 1
      %p138 = por %p136, %p137
      %p140 = scmp.ne.s32.totalorder %s123, %s139
      %p141 = scmp.eq.s32.totalorder %s21, 0
      %p142 = por %p140, %p141
      %p143 = scmp.le.s32.totalorder 1, %s15
      %p144 = scmp.lt.s32.totalorder %s15, 3
      %p145 = pnand %p143, %p144
      %p146 = pneg %p145
      // Predicated region
      $region9: #{tpu_custom_call.1} parent=5 // pred_check
        _
      $region10: #{tpu_custom_call.1} parent=5 // pred_check_branch
        %148 = sbr.rel (%p145) target = $region12
      $region11: #{tpu_custom_call.1} parent=5 // pred_region
        %s149 = ssub.s32 %s15, 1
        // Predicated region
        $region13: #{tpu_custom_call.1} parent=11 // pred_check
          %p150 = pneg %p81
        $region14: #{tpu_custom_call.1} parent=11 // pred_check_branch
          %152 = sbr.rel (%p150) target = $region16
        $region15: #{tpu_custom_call.1} parent=11 // pred_region
          %s153 = smul.u32 2, %s24
          %p154 = scmp.lt.s32.totalorder %s153, 1
          %s155 = scalar_select %p154, %s153, 1
          %s156 = smul.addr %s155, 2
          %s157 = scalar_lea.vmem %s1, %s156
          %s158 = smul.u32 2, %s24
        $region16: #{tpu_custom_call.1} parent=11 // pred_fallthru
          _
        // Predicated region
        $region17: #{tpu_custom_call.1} parent=11 // pred_check
          %p159 = pneg %p107
        $region18: #{tpu_custom_call.1} parent=11 // pred_check_branch
          %161 = sbr.rel (%p159) target = $region20
        $region19: #{tpu_custom_call.1} parent=11 // pred_region
          %s162 = smul.u32 2, %s24
          %p163 = scmp.lt.s32.totalorder %s162, 1
          %s164 = scalar_select %p163, %s162, 1
          %s165 = smul.addr %s164, 2
          %s166 = scalar_lea.vmem %s2, %s165
          %s167 = smul.u32 2, %s24
        $region20: #{tpu_custom_call.1} parent=11 // pred_fallthru
          _
      $region12: #{tpu_custom_call.1} parent=5 // pred_fallthru
        _
      %p168 = scmp.lt.s32.totalorder %s15, 2
      // Predicated region
      $region21: #{tpu_custom_call.1} parent=5 // pred_check
        %p169 = pneg %p168
      $region22: #{tpu_custom_call.1} parent=5 // pred_check_branch
        %171 = sbr.rel (%p169) target = $region24
      $region23: #{tpu_custom_call.1} parent=5 // pred_region
        // Predicated region
        $region25: #{tpu_custom_call.1} parent=23 // pred_check
          %p172 = pneg %p49
        $region26: #{tpu_custom_call.1} parent=23 // pred_check_branch
          %174 = sbr.rel (%p172) target = $region28
        $region27: #{tpu_custom_call.1} parent=23 // pred_region
          %s175 = sand.u32 %s39, 1
          %s176 = scalar_lea.sflag [#allocation3], %s175
          %s177 = sand.u32 %s39, 1
          %s178 = smul.addr %s177, 8
          %s179 = scalar_lea.vmem [#allocation2], %s178
          %s180 = smul.u32 2, %s22
          %s182 = ssub.s32 128, 128
          %183 = vsyncadd %s176, %s182
          %s184 = smul.addr %s180, 2
          %s185 = smul.addr %s23, 4
          %s186 = sadd.s32 %s184, %s185
          %s187 = smul.addr %s186, 32
          %s188 = scalar_lea.hbm %s0, %s187
          %s189 = sshll.u32 %s179, 4
          %s190 = int_to_ptr.vmem [resolvable:$true] %s189
          %195 = dma.hbm_to_vmem [thread:$0]  %s188, 128, %s190, %s176, 64, 64, 4
        $region28: #{tpu_custom_call.1} parent=23 // pred_fallthru
          _
      $region24: #{tpu_custom_call.1} parent=5 // pred_fallthru
        _
      %p196 = scmp.le.s32.totalorder 1, %s15
      %p197 = scmp.lt.s32.totalorder %s15, 3
      %p198 = pnand %p196, %p197
      %p199 = pneg %p198
      // Predicated region
      $region29: #{tpu_custom_call.1} parent=5 // pred_check
        _
      $region30: #{tpu_custom_call.1} parent=5 // pred_check_branch
        %201 = sbr.rel (%p198) target = $region32
      $region31: #{tpu_custom_call.1} parent=5 // pred_region
        %s202 = ssub.s32 %s15, 1
        %s203 = sand.u32 %s42, 1
        %s204 = scalar_lea.sflag [#allocation3], %s203
        %s205 = sand.u32 %s42, 1
        %s206 = smul.addr %s205, 8
        %s207 = scalar_lea.vmem [#allocation2], %s206
        // Predicated region
        $region33: #{tpu_custom_call.1} parent=31 // pred_check
          %p208 = pneg %p55
        $region34: #{tpu_custom_call.1} parent=31 // pred_check_branch
          %210 = sbr.rel (%p208) target = $region36
        $region35: #{tpu_custom_call.1} parent=31 // pred_region
          %211 = dma.done %s204, 128
        $region36: #{tpu_custom_call.1} parent=31 // pred_fallthru
          _
        %s212 = sand.u32 %s42, 1
        %s213 = scalar_lea.sflag [#allocation3], %s212
        %s214 = sand.u32 %s42, 1
        %s215 = smul.addr %s214, 8
        %s216 = scalar_lea.vmem [#allocation2], %s215
        %p217 = pneg %p55
        %p218 = pneg %p52
        %s219 = smul.u32 2, %s24
        %p220 = scmp.lt.s32.totalorder %s219, 1
        %s221 = scalar_select %p220, %s219, 1
        %s222 = smul.addr %s221, 2
        %s223 = scalar_lea.vmem %s1, %s222
        %p224 = pneg %p81
        %p225 = pneg %p78
        %s226 = smul.u32 2, %s24
        %p227 = scmp.lt.s32.totalorder %s226, 1
        %s228 = scalar_select %p227, %s226, 1
        %s229 = smul.addr %s228, 2
        %s230 = scalar_lea.vmem %s2, %s229
        %p231 = pneg %p107
        %p232 = pneg %p104
        %p233 = pneg %p135
        %p234 = pneg %p132
        %s235 = sand.u32 %s122, 1
        %s236 = scalar_lea.sflag [#allocation4], %s235
        %s237 = sand.u32 %s122, 1
        %s238 = smul.addr %s237, 8
        %s239 = scalar_lea.vmem [#allocation5], %s238
        %s240 = smul.u32 2, %s24
        %s241 = smul.u32 2, %s24
        %p242 = scmp.lt.s32.totalorder %s241, 1
        %s243 = scalar_select %p242, %s241, 1
        %s244 = smul.addr %s243, 2
        %s245 = scalar_lea.vmem %s1, %s244
        %s246 = smul.u32 2, %s24
        %s247 = smul.u32 2, %s24
        %p248 = scmp.lt.s32.totalorder %s247, 1
        %s249 = scalar_select %p248, %s247, 1
        %s250 = smul.addr %s249, 2
        %s251 = scalar_lea.vmem %s2, %s250
        %s252 = smul.u32 2, %s24
        %s253 = smul.u32 2, %s24
        %v254 = vld [vmem:[%s207] sm:$0xf]
        %v255 = vld [vmem:[%s207 + $0x4] sm:$0xf]
        %v259 = vunpack.c.l.s4 1983009808
        %v260 = vunpack.c.0.s8 %v259
        %v261 = vlaneseq
        %v262 = vshrl.u32 %v261, 7
        %v263 = vsub.s32 %v260, %v262
        %v264 = vrot.slane %v254, %v263
        %v265 = vcombine.high %v264, %v264
        %v267 = vunpack.c.l.s4 1983009808
        %v268 = vunpack.c.0.s8 %v267
        %v269 = vlaneseq
        %v270 = vshrl.u32 %v269, 7
        %v271 = vsub.s32 %v268, %v270
        %v272 = vrot.slane %v255, %v271
        %v273 = vcombine.high %v272, %v272
        %vm278 = vcmask 1041408
        %v279 = vsel %vm278, %v264, 0.0
        %v280 = vsel %vm278, %v265, 0.0
        %v281 = vadd.f32 %v279, %v280
        %282 = vadd.xlane.f32.xlu0 %v281
        %v283 = vpop.xlane.xlu0 %282
        %v284 = vsel %vm278, %v272, 0.0
        %v285 = vsel %vm278, %v273, 0.0
        %v286 = vadd.f32 %v284, %v285
        %287 = vadd.xlane.f32.xlu0 %v286
        %v288 = vpop.xlane.xlu0 %287
        %v289 = vsel %vm278, %v283, 0.0
        %v290 = vrot.slane %v289, 4
        %v291 = vadd.f32 %v289, %v290
        %v292 = vrot.slane %v291, 2
        %v293 = vadd.f32 %v291, %v292
        %v294 = vrot.slane %v293, 1
        %v295 = vadd.f32 %v293, %v294
        %v296 = vsel %vm278, %v288, 0.0
        %v297 = vrot.slane %v296, 4
        %v298 = vadd.f32 %v296, %v297
        %v299 = vrot.slane %v298, 2
        %v300 = vadd.f32 %v298, %v299
        %v301 = vrot.slane %v300, 1
        %v302 = vadd.f32 %v300, %v301
        %v303 = vmul.f32 %v295, 0.001953125
        %v304 = vmul.f32 %v302, 0.001953125
        %v305 = vsub.f32 %v254, %v303
        %v306 = vsub.f32 %v255, %v304
        %v307 = vmul.f32 %v305, %v305
        %v308 = vmul.f32 %v306, %v306
        %v312 = vunpack.c.l.s4 1983009808
        %v313 = vunpack.c.0.s8 %v312
        %v314 = vlaneseq
        %v315 = vshrl.u32 %v314, 7
        %v316 = vsub.s32 %v313, %v315
        %v317 = vrot.slane %v307, %v316
        %v318 = vcombine.high %v317, %v317
        %v320 = vunpack.c.l.s4 1983009808
        %v321 = vunpack.c.0.s8 %v320
        %v322 = vlaneseq
        %v323 = vshrl.u32 %v322, 7
        %v324 = vsub.s32 %v321, %v323
        %v325 = vrot.slane %v308, %v324
        %v326 = vcombine.high %v325, %v325
        %v331 = vsel %vm278, %v317, 0.0
        %v332 = vsel %vm278, %v318, 0.0
        %v333 = vadd.f32 %v331, %v332
        %334 = vadd.xlane.f32.xlu0 %v333
        %v335 = vpop.xlane.xlu0 %334
        %v336 = vsel %vm278, %v325, 0.0
        %v337 = vsel %vm278, %v326, 0.0
        %v338 = vadd.f32 %v336, %v337
        %339 = vadd.xlane.f32.xlu0 %v338
        %v340 = vpop.xlane.xlu0 %339
        %v341 = vsel %vm278, %v335, 0.0
        %v342 = vrot.slane %v341, 4
        %v343 = vadd.f32 %v341, %v342
        %v344 = vrot.slane %v343, 2
        %v345 = vadd.f32 %v343, %v344
        %v346 = vrot.slane %v345, 1
        %v347 = vadd.f32 %v345, %v346
        %v348 = vsel %vm278, %v340, 0.0
        %v349 = vrot.slane %v348, 4
        %v350 = vadd.f32 %v348, %v349
        %v351 = vrot.slane %v350, 2
        %v352 = vadd.f32 %v350, %v351
        %v353 = vrot.slane %v352, 1
        %v354 = vadd.f32 %v352, %v353
        %v355 = vmul.f32 %v347, 0.0019569471
        %v356 = vmul.f32 %v354, 0.0019569471
        %v357 = vrsqrt.pop %v355
        %v358 = vmul.f32 %v355, %v357
        %vm359 = vcmp.eq.f32.partialorder %v355, inf
        %v360 = vsel %vm359, %v355, %v358
        %vm361 = vcmp.eq.f32.partialorder %v355, 0.0
        %v362 = vand.u32 %v355, 2147483648
        %v363 = vsel %vm361, %v362, %v360
        %v364 = vrsqrt.pop %v356
        %v365 = vmul.f32 %v356, %v364
        %vm366 = vcmp.eq.f32.partialorder %v356, inf
        %v367 = vsel %vm366, %v356, %v365
        %vm368 = vcmp.eq.f32.partialorder %v356, 0.0
        %v369 = vand.u32 %v356, 2147483648
        %v370 = vsel %vm368, %v369, %v367
        %v371 = vadd.f32 %v363, 1e-10
        %v372 = vadd.f32 %v370, 1e-10
        %v373 = vrcp.pop %v371
        %v374 = vrcp.pop %v372
        %v375 = vld [vmem:[%s245] sm:$0x3]
        %v376 = vld [vmem:[%s245 + $0x2] sm:$0x3]
        %v377 = vld [vmem:[%s251] sm:$0x3]
        %v378 = vld [vmem:[%s251 + $0x2] sm:$0x3]
        %v379 = vmul.f32 %v375, %v373
        %v380 = vmul.f32 %v376, %v374
        %v381 = vmul.f32 %v303, %v379
        %v382 = vmul.f32 %v304, %v380
        %v383 = vsub.f32 %v377, %v381
        %v384 = vsub.f32 %v378, %v382
        %386 = vset.pattern.permute.xlu0 0
        %387 = vperm.xlu0 %386, %v379
        %v388 = vpop.permute.xlu0 %387
        %390 = vset.pattern.permute.xlu0 0
        %391 = vperm.xlu0 %390, %v380
        %v392 = vpop.permute.xlu0 %391
        %v394 = vunpack.c.l.s4 269488144
        %v395 = vunpack.c.0.s8 %v394
        %v396 = vlaneseq
        %v397 = vshrl.u32 %v396, 7
        %v398 = vsub.s32 %v395, %v397
        %v399 = vrot.slane %v388, %v398
        %v401 = vunpack.c.l.s4 269488144
        %v402 = vunpack.c.0.s8 %v401
        %v403 = vlaneseq
        %v404 = vshrl.u32 %v403, 7
        %v405 = vsub.s32 %v402, %v404
        %v406 = vrot.slane %v392, %v405
        %v409 = vmul.f32 %v254, %v399
        %v410 = vmul.f32 %v255, %v406
        %412 = vset.pattern.permute.xlu0 0
        %413 = vperm.xlu0 %412, %v383
        %v414 = vpop.permute.xlu0 %413
        %416 = vset.pattern.permute.xlu0 0
        %417 = vperm.xlu0 %416, %v384
        %v418 = vpop.permute.xlu0 %417
        %v420 = vunpack.c.l.s4 269488144
        %v421 = vunpack.c.0.s8 %v420
        %v422 = vlaneseq
        %v423 = vshrl.u32 %v422, 7
        %v424 = vsub.s32 %v421, %v423
        %v425 = vrot.slane %v414, %v424
        %v427 = vunpack.c.l.s4 269488144
        %v428 = vunpack.c.0.s8 %v427
        %v429 = vlaneseq
        %v430 = vshrl.u32 %v429, 7
        %v431 = vsub.s32 %v428, %v430
        %v432 = vrot.slane %v418, %v431
        %v435 = vadd.f32 %v409, %v425
        %v436 = vadd.f32 %v410, %v432
        %437 = vst [vmem:[%s239] sm:$0xf] %v435
        %438 = vst [vmem:[%s239 + $0x4] sm:$0xf] %v436
        %s439 = sand.u32 %s122, 1
        %s440 = scalar_lea.sflag [#allocation4], %s439
        %s441 = sand.u32 %s122, 1
        %s442 = smul.addr %s441, 8
        %s443 = scalar_lea.vmem [#allocation5], %s442
        // Predicated region
        $region37: #{tpu_custom_call.1} parent=31 // pred_check
          %p444 = pneg %p132
        $region38: #{tpu_custom_call.1} parent=31 // pred_check_branch
          %446 = sbr.rel (%p444) target = $region40
        $region39: #{tpu_custom_call.1} parent=31 // pred_region
          %s447 = smul.u32 2, %s24
          %s449 = ssub.s32 128, 128
          %450 = vsyncadd %s440, %s449
          %s451 = smul.addr %s447, 2
          %s452 = smul.addr %s25, 4
          %s453 = sadd.s32 %s451, %s452
          %s454 = smul.addr %s453, 32
          %s455 = scalar_lea.hbm %s3, %s454
          %s456 = sshll.u32 %s443, 4
          %s457 = int_to_ptr.vmem [resolvable:$true] %s456
          %462 = dma.vmem_to_hbm [thread:$0]  %s457, 128, %s455, %s440, 64, 64, 4
        $region40: #{tpu_custom_call.1} parent=31 // pred_fallthru
          _
      $region32: #{tpu_custom_call.1} parent=5 // pred_fallthru
        _
      %p463 = scmp.le.s32.totalorder 2, %s15
      // Predicated region
      $region41: #{tpu_custom_call.1} parent=5 // pred_check
        %p464 = pneg %p463
      $region42: #{tpu_custom_call.1} parent=5 // pred_check_branch
        %466 = sbr.rel (%p464) target = $region44
      $region43: #{tpu_custom_call.1} parent=5 // pred_region
        %s467 = ssub.s32 %s15, 2
        // Predicated region
        $region45: #{tpu_custom_call.1} parent=43 // pred_check
          %p468 = pneg %p138
        $region46: #{tpu_custom_call.1} parent=43 // pred_check_branch
          %470 = sbr.rel (%p468) target = $region48
        $region47: #{tpu_custom_call.1} parent=43 // pred_region
          %s471 = sand.u32 %s123, 1
          %s472 = scalar_lea.sflag [#allocation4], %s471
          %s473 = sand.u32 %s123, 1
          %s474 = smul.addr %s473, 8
          %s475 = scalar_lea.vmem [#allocation5], %s474
          %476 = dma.done %s472, 128
        $region48: #{tpu_custom_call.1} parent=43 // pred_fallthru
          _
      $region44: #{tpu_custom_call.1} parent=5 // pred_fallthru
        _
    $region6: #{tpu_custom_call.1} parent=1 // loop_footer
      %s19 = sadd.s32 1, %s15
    $region7: #{tpu_custom_call.1} parent=1 // loop_footer_branch
      %14 = sbr.rel target = $region3
    $region8: #{tpu_custom_call.1} parent=1 // loop_exit
      _
    %477 = vsyncpa [#allocation3], 1
    %s478 = scalar_lea.sflag [#allocation3], 1
    %479 = vsyncpa %s478, 1
    %480 = vsyncpa [#allocation4], 1
    %s481 = scalar_lea.sflag [#allocation4], 1
    %482 = vsyncpa %s481, 1

</llo_original>
